<compile_context>
chip_gen: v6e
topology: v6e:2x2x1
jax: 0.10.0
libtpu: 0.0.40
codegen_flags: <defaults>
</compile_context>

<pallas_src>
import functools

import numpy as np
import jax
import jax.numpy as jnp
from jax import lax
from jax.experimental import pallas as pl
from jax.experimental.pallas import tpu as pltpu


# ---------------------------------------------------------------------------
# Kernels
# ---------------------------------------------------------------------------
def _stats_kernel(x_ref, sum_ref, sumsq_ref, *, n_rows, tile_n, mask_rows):
    """Accumulate per-feature sum and sum-of-squares over batch tiles."""
    @pl.when(pl.program_id(0) == 0)
    def _():
        sum_ref[...] = jnp.zeros_like(sum_ref)
        sumsq_ref[...] = jnp.zeros_like(sumsq_ref)

    x = x_ref[...].astype(jnp.float32)
    if mask_rows:  # last tile may run past the true batch size
        row = pl.program_id(0) * tile_n + lax.broadcasted_iota(
            jnp.int32, x.shape, 0)
        x = jnp.where(row < n_rows, x, 0.0)

    sum_ref[...] += jnp.sum(x, axis=0, keepdims=True)
    sumsq_ref[...] += jnp.sum(x * x, axis=0, keepdims=True)


def _norm_kernel(x_ref, mean_ref, var_ref, log_gamma_ref, beta_ref,
                 y_ref, ladj_ref, *, eps):
    """Fused affine-normalize + log|det J| broadcast for one batch tile."""
    x = x_ref[...].astype(jnp.float32)
    mean = mean_ref[...]
    var = var_ref[...]
    lg = log_gamma_ref[...]
    beta = beta_ref[...]

    inv_std = 1.0 / jnp.sqrt(var + eps)          # (1, D)
    scale = jnp.exp(lg) * inv_std                # (1, D)
    y = (x - mean) * scale + beta                # (TILE_N, D)
    y_ref[...] = y.astype(y_ref.dtype)

    ladj_row = lg - 0.5 * jnp.log(var + eps)     # (1, D)
    ladj_ref[...] = jnp.broadcast_to(ladj_row, ladj_ref.shape).astype(
        ladj_ref.dtype)


# ---------------------------------------------------------------------------
# Module wrapper (mirrors the PyTorch BatchNorm forward)
# ---------------------------------------------------------------------------
class BatchNorm:
    def __init__(self, input_size, momentum=0.9, eps=1e-05, tile_n=512):
        self.input_size = input_size
        self.momentum = momentum
        self.eps = eps
        self.tile_n = tile_n            # sized for v7x's 32 MiB scoped VMEM; sweep per chip
        self.log_gamma = jnp.zeros((input_size,), jnp.float32)
        self.beta = jnp.zeros((input_size,), jnp.float32)
        self.running_mean = jnp.zeros((input_size,), jnp.float32)
        self.running_var = jnp.ones((input_size,), jnp.float32)
        self.training = True

    # -- batch statistics (Pallas reduction over the batch axis) -------------
    def _batch_stats(self, x):
        n, d = x.shape
        tile_n = n if n <= self.tile_n else self.tile_n
        grid = (pl.cdiv(n, tile_n),)
        s, ss = pl.pallas_call(
            functools.partial(_stats_kernel, n_rows=n, tile_n=tile_n,
                              mask_rows=(n % tile_n != 0)),
            out_shape=(jax.ShapeDtypeStruct((1, d), jnp.float32),
                       jax.ShapeDtypeStruct((1, d), jnp.float32)),
            grid=grid,
            in_specs=[pl.BlockSpec((tile_n, d), lambda i: (i, 0))],
            out_specs=(pl.BlockSpec((1, d), lambda i: (0, 0)),
                       pl.BlockSpec((1, d), lambda i: (0, 0))),
            compiler_params=pltpu.CompilerParams(
                dimension_semantics=("arbitrary",)),
        )(x)
        # (D,)-sized finalize: mean and unbiased variance (torch .var default)
        mean = s[0] / n
        var = jnp.maximum(ss[0] - s[0] * mean, 0.0) / max(n - 1, 1)
        return mean, var

    # -- fused normalize + jacobian (Pallas, parallel over batch tiles) ------
    def _normalize(self, x, mean, var):
        n, d = x.shape
        tile_n = n if n <= self.tile_n else self.tile_n
        grid = (pl.cdiv(n, tile_n),)
        row_spec = pl.BlockSpec((1, d), lambda i: (0, 0))
        y, ladj = pl.pallas_call(
            functools.partial(_norm_kernel, eps=self.eps),
            out_shape=(jax.ShapeDtypeStruct((n, d), x.dtype),
                       jax.ShapeDtypeStruct((n, d), jnp.float32)),
            grid=grid,
            in_specs=[pl.BlockSpec((tile_n, d), lambda i: (i, 0)),
                      row_spec, row_spec, row_spec, row_spec],
            out_specs=(pl.BlockSpec((tile_n, d), lambda i: (i, 0)),
                       pl.BlockSpec((tile_n, d), lambda i: (i, 0))),
            compiler_params=pltpu.CompilerParams(
                dimension_semantics=("parallel",)),
        )(x, mean.reshape(1, d), var.reshape(1, d),
          self.log_gamma.reshape(1, d), self.beta.reshape(1, d))
        return y, ladj

    def forward(self, x, cond_y=None):
        if self.training:
            mean, var = self._batch_stats(x)
            self.batch_mean = mean
            self.batch_var = var
            # stateful (D,)-sized buffer update -- done outside Pallas on purpose
            self.running_mean = (self.running_mean * self.momentum
                                 + mean * (1.0 - self.momentum))
            self.running_var = (self.running_var * self.momentum
                                + var * (1.0 - self.momentum))
        else:
            mean = self.running_mean
            var = self.running_var
        return self._normalize(x, mean, var)


# ---------------------------------------------------------------------------
# Pure-numpy reference
# ---------------------------------------------------------------------------
def ref_forward(x, log_gamma, beta, running_mean, running_var,
                momentum, eps, training):
    x = np.asarray(x, np.float64)
    log_gamma = np.asarray(log_gamma, np.float64)
    beta = np.asarray(beta, np.float64)
    running_mean = np.asarray(running_mean, np.float64)
    running_var = np.asarray(running_var, np.float64)
    if training:
        mean = x.mean(0)
        var = x.var(0, ddof=1)              # torch .var(0) is unbiased
        running_mean = momentum * running_mean + (1 - momentum) * mean
        running_var = momentum * running_var + (1 - momentum) * var
    else:
        mean = running_mean
        var = running_var
    x_hat = (x - mean) / np.sqrt(var + eps)
    y = np.exp(log_gamma) * x_hat + beta
    ladj = np.broadcast_to(log_gamma - 0.5 * np.log(var + eps), x.shape)
    return y, ladj, running_mean, running_var


if __name__ == "__main__":
    N, D = 16, 32
    key = jax.random.PRNGKey(0)
    k1, k2, k3 = jax.random.split(key, 3)
    x = jax.random.normal(k1, (N, D), dtype=jnp.float32) * 2.0 + 0.5
    log_gamma = jax.random.normal(k2, (D,), dtype=jnp.float32) * 0.1
    beta = jax.random.normal(k3, (D,), dtype=jnp.float32) * 0.1

    bn = BatchNorm(D)
    bn.log_gamma = log_gamma
    bn.beta = beta

    # ---- training-mode forward --------------------------------------------
    y, ladj = bn.forward(x)
    y = jax.block_until_ready(y)
    ladj = jax.block_until_ready(ladj)

    ref_y, ref_ladj, ref_rm, ref_rv = ref_forward(
        x, log_gamma, beta, np.zeros(D), np.ones(D),
        bn.momentum, bn.eps, training=True)
    np.testing.assert_allclose(np.asarray(y), ref_y, rtol=1e-5, atol=1e-5)
    np.testing.assert_allclose(np.asarray(ladj), ref_ladj, rtol=1e-5, atol=1e-5)
    np.testing.assert_allclose(np.asarray(bn.running_mean), ref_rm,
                               rtol=1e-5, atol=1e-5)
    np.testing.assert_allclose(np.asarray(bn.running_var), ref_rv,
                               rtol=1e-5, atol=1e-5)

    # ---- eval-mode forward (uses running stats) ----------------------------
    bn.training = False
    y_e, ladj_e = bn.forward(x)
    y_e = jax.block_until_ready(y_e)
    ladj_e = jax.block_until_ready(ladj_e)

    ref_y_e, ref_ladj_e, _, _ = ref_forward(
        x, log_gamma, beta, ref_rm, ref_rv, bn.momentum, bn.eps,
        training=False)
    np.testing.assert_allclose(np.asarray(y_e), ref_y_e, rtol=1e-5, atol=1e-5)
    np.testing.assert_allclose(np.asarray(ladj_e), ref_ladj_e,
                               rtol=1e-5, atol=1e-5)

    print("KERNEL_OK")
</pallas_src>

<mosaic_0001>
module attributes {stable_mosaic.version = 11 : i64} {
  func.func @_stats_kernel(%arg0: i32, %arg1: memref<16x32xf32, #tpu.memory_space<vmem>>, %arg2: memref<1x32xf32, #tpu.memory_space<vmem>>, %arg3: memref<1x32xf32, #tpu.memory_space<vmem>>) attributes {dimension_semantics = [#tpu.dimension_semantics<arbitrary>], iteration_bounds = array<i64: 1>, scalar_prefetch = 0 : i64, scratch_operands = 0 : i64, tpu.core_type = #tpu.core_type<tc>, window_params = [{transform_indices = @transform_0, window_bounds = array<i64: 16, 32>}, {pipeline_mode = #tpu.pipeline_mode<synchronous>, transform_indices = @transform_1, window_bounds = array<i64: 1, 32>}, {pipeline_mode = #tpu.pipeline_mode<synchronous>, transform_indices = @transform_2, window_bounds = array<i64: 1, 32>}]} {
    %c0_i32 = arith.constant 0 : i32
    %0 = arith.cmpi eq, %arg0, %c0_i32 : i32
    %1 = arith.extui %0 : i1 to i32
    %c0_i32_0 = arith.constant 0 : i32
    %2 = arith.cmpi ne, %1, %c0_i32_0 : i32
    scf.if %2 {
      %cst_11 = arith.constant 0.000000e+00 : f32
      %15 = vector.broadcast %cst_11 : f32 to vector<1x32xf32>
      %c0_12 = arith.constant 0 : index
      %c0_13 = arith.constant 0 : index
      %16 = vector.load %arg2[%c0_12, %c0_13] : memref<1x32xf32, #tpu.memory_space<vmem>>, vector<1x32xf32>
      tpu.vector_store %arg2[%c0_12, %c0_13], %15 {strides = array<i32>} : memref<1x32xf32, #tpu.memory_space<vmem>>, vector<1x32xf32>,
      %cst_14 = arith.constant 0.000000e+00 : f32
      %17 = vector.broadcast %cst_14 : f32 to vector<1x32xf32>
      %c0_15 = arith.constant 0 : index
      %c0_16 = arith.constant 0 : index
      %18 = vector.load %arg3[%c0_15, %c0_16] : memref<1x32xf32, #tpu.memory_space<vmem>>, vector<1x32xf32>
      tpu.vector_store %arg3[%c0_15, %c0_16], %17 {strides = array<i32>} : memref<1x32xf32, #tpu.memory_space<vmem>>, vector<1x32xf32>,
    } else {
    }
    %c0 = arith.constant 0 : index
    %c0_1 = arith.constant 0 : index
    %3 = vector.load %arg1[%c0, %c0_1] : memref<16x32xf32, #tpu.memory_space<vmem>>, vector<16x32xf32>
    %c0_2 = arith.constant 0 : index
    %c0_3 = arith.constant 0 : index
    %4 = vector.load %arg2[%c0_2, %c0_3] : memref<1x32xf32, #tpu.memory_space<vmem>>, vector<1x32xf32>
    %cst = arith.constant dense<0.000000e+00> : vector<32xf32>
    %5 = vector.multi_reduction <add>, %3, %cst [0] : vector<16x32xf32> to vector<32xf32>
    %6 = vector.shape_cast %5 : vector<32xf32> to vector<1x32xf32>
    %7 = arith.addf %4, %6 : vector<1x32xf32>
    %c0_4 = arith.constant 0 : index
    %c0_5 = arith.constant 0 : index
    %8 = vector.load %arg2[%c0_4, %c0_5] : memref<1x32xf32, #tpu.memory_space<vmem>>, vector<1x32xf32>
    tpu.vector_store %arg2[%c0_4, %c0_5], %7 {strides = array<i32>} : memref<1x32xf32, #tpu.memory_space<vmem>>, vector<1x32xf32>,
    %c0_6 = arith.constant 0 : index
    %c0_7 = arith.constant 0 : index
    %9 = vector.load %arg3[%c0_6, %c0_7] : memref<1x32xf32, #tpu.memory_space<vmem>>, vector<1x32xf32>
    %10 = arith.mulf %3, %3 : vector<16x32xf32>
    %cst_8 = arith.constant dense<0.000000e+00> : vector<32xf32>
    %11 = vector.multi_reduction <add>, %10, %cst_8 [0] : vector<16x32xf32> to vector<32xf32>
    %12 = vector.shape_cast %11 : vector<32xf32> to vector<1x32xf32>
    %13 = arith.addf %9, %12 : vector<1x32xf32>
    %c0_9 = arith.constant 0 : index
    %c0_10 = arith.constant 0 : index
    %14 = vector.load %arg3[%c0_9, %c0_10] : memref<1x32xf32, #tpu.memory_space<vmem>>, vector<1x32xf32>
    tpu.vector_store %arg3[%c0_9, %c0_10], %13 {strides = array<i32>} : memref<1x32xf32, #tpu.memory_space<vmem>>, vector<1x32xf32>,
    return
  }
  func.func @transform_0(%arg0: i32) -> (i32, i32) {
    %c0_i32 = arith.constant 0 : i32
    %c0_i32_0 = arith.constant 0 : i32
    return %arg0, %c0_i32 : i32, i32
  }
  func.func @transform_1(%arg0: i32) -> (i32, i32) {
    %c0_i32 = arith.constant 0 : i32
    %c0_i32_0 = arith.constant 0 : i32
    %c0_i32_1 = arith.constant 0 : i32
    return %c0_i32, %c0_i32_0 : i32, i32
  }
  func.func @transform_2(%arg0: i32) -> (i32, i32) {
    %c0_i32 = arith.constant 0 : i32
    %c0_i32_0 = arith.constant 0 : i32
    %c0_i32_1 = arith.constant 0 : i32
    return %c0_i32, %c0_i32_0 : i32, i32
  }
}

</mosaic_0001>

<llo_original>
// kernel: tpu_custom_call.1
$region0: #{tpu_custom_call.1}
  #allocation0 [shape = 'u32[]', space=smem, size = 0x4, offset = 0x4, fixed_abs, tag = 'smem constant byte address 0x4 - core index']
  #allocation1 [shape = 'u32[144,128]{1,0:T(1,128)}', space=vmem, size = 0x12000, scoped, tag = 'internal scratch']
  %s0 = inlined_call_operand.hbm [shape: f32[16,32], index: 0, kind: input, shape index: {}]
  %s1 = inlined_call_operand.hbm [shape: f32[1,32], index: 1, kind: output, shape index: {0}]
  %s2 = inlined_call_operand.hbm [shape: f32[1,32], index: 2, kind: output, shape index: {1}]
  %3 = xla_tuple %s1, %s2
  %s4 = sld [smem:[#allocation0]]
  $region30: #{tpu_custom_call.1} parent=0
    _
  %s6 = ssub.s32 1, %s4
  %s7 = scalar_select 0, %s6, %s4
  $region1: #{tpu_custom_call.1} parent=0
    #allocation2 [shape = 'u8[8192]{0}', space=vmem, size = 0x2000, scoped, tag = 'input window, operand 0, single buffered']
    #allocation3 [shape = 's32[1]{0}', space=sflag, size = 0x4, scoped, tag = 'scoped memory for tpu_custom_call.1']
    #allocation4 [shape = 's32[1]{0}', space=sflag, size = 0x4, scoped, tag = 'scoped memory for tpu_custom_call.1']
    #allocation5 [shape = 'u8[512]{0}', space=vmem, size = 0x400, scoped, tag = 'output window, operand 0, single buffered']
    #allocation6 [shape = 'u8[512]{0}', space=vmem, size = 0x400, scoped, tag = 'output window, operand 1, single buffered']
    #allocation7 [shape = 's32[1]{0}', space=sflag, size = 0x4, scoped, tag = 'scoped memory for tpu_custom_call.1']
    %8 = vsyncpa [#allocation3], 0
    %9 = vsyncpa [#allocation4], 0
    %10 = vsyncpa [#allocation7], 0
    // Predicated region
    $region2: #{tpu_custom_call.1} parent=1 // pred_check
      _
    $region3: #{tpu_custom_call.1} parent=1 // pred_check_branch
      %12 = sbr.rel (0) target = $region5
    $region4: #{tpu_custom_call.1} parent=1 // pred_region
      %s14 = ssub.s32 256, 256
      %15 = vsyncadd [#allocation3], %s14
      %s16 = sshll.u32 [#allocation2], 4
      %s17 = int_to_ptr.vmem [resolvable:$true] %s16
      %22 = dma.hbm_to_vmem [thread:$0]  %s0, 256, %s17, [#allocation3], 128, 128, 8
    $region5: #{tpu_custom_call.1} parent=1 // pred_fallthru
      _
    // Predicated region
    $region6: #{tpu_custom_call.1} parent=1 // pred_check
      _
    $region7: #{tpu_custom_call.1} parent=1 // pred_check_branch
      %24 = sbr.rel (0) target = $region9
    $region8: #{tpu_custom_call.1} parent=1 // pred_region
      %25 = dma.done [#allocation3], 256
    $region9: #{tpu_custom_call.1} parent=1 // pred_fallthru
      _
    %p26 = scmp.eq.s32.totalorder 0, 0
    // Predicated region
    $region10: #{tpu_custom_call.1} parent=1 // pred_check
      %p27 = pneg %p26
    $region11: #{tpu_custom_call.1} parent=1 // pred_check_branch
      %29 = sbr.rel (%p27) target = $region13
    $region12: #{tpu_custom_call.1} parent=1 // pred_region
      %vm30 = vcmask 253952
      %31 = vst.msk [vmem:[#allocation5] sm:$0x1] %vm30, 0.0
      %32 = vst.msk [vmem:[#allocation6] sm:$0x1] %vm30, 0.0
    $region13: #{tpu_custom_call.1} parent=1 // pred_fallthru
      _
    %v33 = vld [vmem:[#allocation2] sm:$0xff]
    %v34 = vld [vmem:[#allocation2 + $0x8] sm:$0xff]
    %v35 = vld [vmem:[#allocation5] sm:$0x1]
    %vm36 = vcmask 261120
    %v37 = vsel %vm36, %v33, 0.0
    %v38 = vsel %vm36, %v34, 0.0
    %v39 = vadd.f32 %v37, %v38
    %v40 = vrot.slane %v39, 4
    %v41 = vadd.f32 %v39, %v40
    %v42 = vrot.slane %v41, 2
    %v43 = vadd.f32 %v41, %v42
    %v44 = vrot.slane %v43, 1
    %v45 = vadd.f32 %v43, %v44
    %v46 = vadd.f32 %v35, %v45
    %vm47 = vcmask 253952
    %48 = vst.msk [vmem:[#allocation5] sm:$0x1] %vm47, %v46
    %v49 = vld [vmem:[#allocation6] sm:$0x1]
    %v50 = vmul.f32 %v33, %v33
    %v51 = vmul.f32 %v34, %v34
    %v52 = vsel %vm36, %v50, 0.0
    %v53 = vsel %vm36, %v51, 0.0
    %v54 = vadd.f32 %v52, %v53
    %v55 = vrot.slane %v54, 4
    %v56 = vadd.f32 %v54, %v55
    %v57 = vrot.slane %v56, 2
    %v58 = vadd.f32 %v56, %v57
    %v59 = vrot.slane %v58, 1
    %v60 = vadd.f32 %v58, %v59
    %v61 = vadd.f32 %v49, %v60
    %62 = vst.msk [vmem:[#allocation6] sm:$0x1] %vm47, %v61
    // Predicated region
    $region14: #{tpu_custom_call.1} parent=1 // pred_check
      _
    $region15: #{tpu_custom_call.1} parent=1 // pred_check_branch
      %64 = sbr.rel (0) target = $region17
    $region16: #{tpu_custom_call.1} parent=1 // pred_region
      %s66 = ssub.s32 16, 16
      %67 = vsyncadd [#allocation4], %s66
      %s69 = sshll.u32 [#allocation5], 4
      %s70 = int_to_ptr.vmem [resolvable:$true] %s69
      %72 = dma.vmem_to_hbm [thread:$0]  %s70, 16, %s1, [#allocation4]
    $region17: #{tpu_custom_call.1} parent=1 // pred_fallthru
      _
    // Predicated region
    $region18: #{tpu_custom_call.1} parent=1 // pred_check
      _
    $region19: #{tpu_custom_call.1} parent=1 // pred_check_branch
      %74 = sbr.rel (0) target = $region21
    $region20: #{tpu_custom_call.1} parent=1 // pred_region
      %s76 = ssub.s32 16, 16
      %77 = vsyncadd [#allocation7], %s76
      %s79 = sshll.u32 [#allocation6], 4
      %s80 = int_to_ptr.vmem [resolvable:$true] %s79
      %82 = dma.vmem_to_hbm [thread:$0]  %s80, 16, %s2, [#allocation7]
    $region21: #{tpu_custom_call.1} parent=1 // pred_fallthru
      _
    // Predicated region
    $region22: #{tpu_custom_call.1} parent=1 // pred_check
      _
    $region23: #{tpu_custom_call.1} parent=1 // pred_check_branch
      %84 = sbr.rel (0) target = $region25
    $region24: #{tpu_custom_call.1} parent=1 // pred_region
      %85 = dma.done [#allocation4], 16
    $region25: #{tpu_custom_call.1} parent=1 // pred_fallthru
      _
    // Predicated region
    $region26: #{tpu_custom_call.1} parent=1 // pred_check
      _
    $region27: #{tpu_custom_call.1} parent=1 // pred_check_branch
      %87 = sbr.rel (0) target = $region29
    $region28: #{tpu_custom_call.1} parent=1 // pred_region
      %88 = dma.done [#allocation7], 16
    $region29: #{tpu_custom_call.1} parent=1 // pred_fallthru
      _
    %89 = vsyncpa [#allocation3], 1
    %90 = vsyncpa [#allocation4], 1
    %91 = vsyncpa [#allocation7], 1

</llo_original>
